<compile_context>
chip_gen: v5e
topology: v5e:2x2
jax: 0.10.0
libtpu: 0.0.40
codegen_flags: <defaults>
</compile_context>

<pallas_src>
import numpy as np

import jax
import jax.numpy as jnp
from jax.experimental import pallas as pl
from jax.experimental.pallas import tpu as pltpu

SCALE = 2                      # scale_factor of the nn.Upsample layer
LANE_TARGET_LO = 128           # fold H rows until the input row is this wide
LANE_CAP = 256                 # cap on the MXU contraction length (v5e advice)
TARGET_OUT_BLOCK_BYTES = 4 * 1024 * 1024
VMEM_LIMIT_BYTES = 48 * 1024 * 1024


def _upsample_matmul_kernel(x_ref, g_ref, o_ref):
    """o = limbs(x) @ g, where g is a 0/1 duplication matrix (resident)."""
    x = x_ref[...]
    g = g_ref[...]                                   # bf16 one-hot, stays resident
    in_dtype = jnp.dtype(x_ref.dtype)

    if in_dtype == jnp.dtype(jnp.bfloat16):
        limbs = (x,)                                 # bf16 passes the MXU exactly
    elif in_dtype == jnp.dtype(jnp.float16):
        xf = x.astype(jnp.float32)                   # exact
        hi = xf.astype(jnp.bfloat16)
        lo = (xf - hi.astype(jnp.float32)).astype(jnp.bfloat16)
        limbs = (hi, lo)                             # x == hi + lo exactly
    else:                                            # f32 / ints / others
        xf = x.astype(jnp.float32)
        hi = xf.astype(jnp.bfloat16)
        r1 = xf - hi.astype(jnp.float32)
        mid = r1.astype(jnp.bfloat16)
        lo = (r1 - mid.astype(jnp.float32)).astype(jnp.bfloat16)
        limbs = (hi, mid, lo)                        # x == hi + mid + lo exactly

    acc = jnp.dot(limbs[0], g, preferred_element_type=jnp.float32)
    for limb in limbs[1:]:
        acc = acc + jnp.dot(limb, g, preferred_element_type=jnp.float32)
    o_ref[...] = acc.astype(o_ref.dtype)             # single cast, single store


def _num_limbs(dtype):
    d = jnp.dtype(dtype)
    if d == jnp.dtype(jnp.bfloat16):
        return 1
    if d == jnp.dtype(jnp.float16):
        return 2
    return 3


def _pick_fold(h, w):
    """Largest divisor k of h with k*w <= LANE_CAP, preferring the smallest k
    that already reaches LANE_TARGET_LO lanes (more rows -> more grid steps)."""
    if w >= LANE_CAP:
        return 1
    best = 1
    for k in range(1, h + 1):
        if h % k:
            continue
        if k * w > LANE_CAP:
            break
        best = k
        if k * w >= LANE_TARGET_LO:
            break
    return best


def _pick_row_tile(m, out_row_bytes):
    """Rows per block: ~TARGET_OUT_BLOCK_BYTES of output, multiple of 8, and
    >= 2 grid steps when the row count allows it (v7x megacore)."""
    tr = max(1, TARGET_OUT_BLOCK_BYTES // max(1, out_row_bytes))
    if tr < m:
        tr = max(8, (tr // 8) * 8)
    tr = min(tr, m)
    if tr >= m and m >= 16:
        tr = max(8, ((m // 2) // 8) * 8)
    return min(tr, m)


@jax.jit
def upsample_nearest_2x_nchw(x):
    """2x nearest-neighbor upsample, NCHW in / NCHW out (PyTorch semantics)."""
    n, c, h, w = x.shape
    h_out, w_out = h * SCALE, w * SCALE
    r = n * c * h
    isz = jnp.dtype(x.dtype).itemsize
    nl = _num_limbs(x.dtype)

    wide = (w > LANE_CAP) and (w % 128 == 0)

    if not wide:
        # ---- folded config: H+W duplication in ONE combined one-hot matmul --
        k = _pick_fold(h, w)
        kin, kout = k * w, 4 * k * w
        m = r // k
        x2 = x.reshape(m, kin)                       # free reshape

        # Combined duplication matrix: g[p, q] = 1 iff the output element q
        # (q = i*4W + a*2W + 2j + b) comes from input element p = i*W + j.
        p = np.arange(kin, dtype=np.int64)[:, None]
        q = np.arange(kout, dtype=np.int64)[None, :]
        src = (q // (4 * w)) * w + (q % (2 * w)) // 2
        g = jnp.asarray(p == src, dtype=jnp.bfloat16)

        tr = _pick_row_tile(m, kout * isz)
        grid = (pl.cdiv(m, tr),)

        out2 = pl.pallas_call(
            _upsample_matmul_kernel,
            out_shape=jax.ShapeDtypeStruct((m, kout), x.dtype),
            grid=grid,
            in_specs=[
                pl.BlockSpec((tr, kin), lambda i: (i, 0)),
                pl.BlockSpec((kin, kout), lambda i: (0, 0)),  # resident one-hot
            ],
            out_specs=pl.BlockSpec((tr, kout), lambda i: (i, 0)),
            compiler_params=pltpu.CompilerParams(
                dimension_semantics=("parallel",),
                vmem_limit_bytes=VMEM_LIMIT_BYTES,
            ),
            cost_estimate=pl.CostEstimate(
                flops=2 * nl * m * kin * kout,
                transcendentals=0,
                bytes_accessed=(1 + SCALE * SCALE) * r * w * isz,
            ),
        )(x2, g)
    else:
        # ---- wide config: W-tiled width one-hot; H-duplicate index is an ----
        # ---- innermost "arbitrary" grid axis (input block stays resident) ---
        tw = 256 if (w % 256 == 0) else 128
        n_wt = w // tw
        x2 = x.reshape(r, w)                         # free reshape

        p = np.arange(tw, dtype=np.int64)[:, None]
        q = np.arange(2 * tw, dtype=np.int64)[None, :]
        g = jnp.asarray(p == (q // 2), dtype=jnp.bfloat16)

        tr = _pick_row_tile(r, 2 * tw * isz)
        grid = (pl.cdiv(r, tr), n_wt, 2)

        out2 = pl.pallas_call(
            _upsample_matmul_kernel,
            out_shape=jax.ShapeDtypeStruct((r, 4 * w), x.dtype),
            grid=grid,
            in_specs=[
                pl.BlockSpec((tr, tw), lambda i, j, a: (i, j)),
                pl.BlockSpec((tw, 2 * tw), lambda i, j, a: (0, 0)),
            ],
            out_specs=pl.BlockSpec(
                (tr, 2 * tw), lambda i, j, a: (i, a * n_wt + j)),
            compiler_params=pltpu.CompilerParams(
                dimension_semantics=("parallel", "parallel", "arbitrary"),
                vmem_limit_bytes=VMEM_LIMIT_BYTES,
            ),
            cost_estimate=pl.CostEstimate(
                flops=2 * nl * r * (4 * w) * tw,
                transcendentals=0,
                bytes_accessed=(1 + SCALE * SCALE) * r * w * isz,
            ),
        )(x2, g)

    # Free reshape back to NCHW: flat row t holds output rows [2kt, 2kt + 2k).
    return out2.reshape(n, c, h_out, w_out)


def _reference_nearest_nchw(x_nchw):
    y = jnp.repeat(x_nchw, SCALE, axis=2)
    y = jnp.repeat(y, SCALE, axis=3)
    return y


if __name__ == "__main__":
    key = jax.random.PRNGKey(0)
    x = jax.random.normal(key, (2, 4, 16, 16), dtype=jnp.float32)  # NCHW

    out = jax.block_until_ready(upsample_nearest_2x_nchw(x))

    ref = _reference_nearest_nchw(x)
    assert out.shape == (2, 4, 32, 32), out.shape
    assert out.dtype == x.dtype
    assert bool(jnp.all(out == ref)), "mismatch vs reference nearest upsample"

    print("KERNEL_OK")
</pallas_src>

<mosaic_0001>
module attributes {stable_mosaic.version = 11 : i64} {
  func.func @_upsample_matmul_kernel(%arg0: i32, %arg1: memref<8x128xf32, #tpu.memory_space<vmem>>, %arg2: memref<128x512xbf16, #tpu.memory_space<vmem>>, %arg3: memref<8x512xf32, #tpu.memory_space<vmem>>) attributes {dimension_semantics = [#tpu.dimension_semantics<parallel>], iteration_bounds = array<i64: 2>, scalar_prefetch = 0 : i64, scratch_operands = 0 : i64, tpu.core_type = #tpu.core_type<tc>, window_params = [{transform_indices = @transform_0, window_bounds = array<i64: 8, 128>}, {pipeline_mode = #tpu.pipeline_mode<synchronous>, transform_indices = @transform_1, window_bounds = array<i64: 128, 512>}, {transform_indices = @transform_2, window_bounds = array<i64: 8, 512>}]} {
    %c0 = arith.constant 0 : index
    %c0_0 = arith.constant 0 : index
    %0 = vector.load %arg1[%c0, %c0_0] : memref<8x128xf32, #tpu.memory_space<vmem>>, vector<8x128xf32>
    %c0_1 = arith.constant 0 : index
    %c0_2 = arith.constant 0 : index
    %1 = vector.load %arg2[%c0_1, %c0_2] : memref<128x512xbf16, #tpu.memory_space<vmem>>, vector<128x512xbf16>
    %2 = arith.truncf %0 : vector<8x128xf32> to vector<8x128xbf16>
    %3 = arith.extf %2 : vector<8x128xbf16> to vector<8x128xf32>
    %4 = arith.subf %0, %3 : vector<8x128xf32>
    %5 = arith.truncf %4 : vector<8x128xf32> to vector<8x128xbf16>
    %6 = arith.extf %5 : vector<8x128xbf16> to vector<8x128xf32>
    %7 = arith.subf %4, %6 : vector<8x128xf32>
    %8 = arith.truncf %7 : vector<8x128xf32> to vector<8x128xbf16>
    %cst = arith.constant dense<0.000000e+00> : vector<8x512xf32>
    %9 = tpu.matmul %2, %1, %cst {dimension_numbers = #tpu.dot_dimension_numbers<[1], [0], [0], [1], [0, 0, 1, 1], [], []>} : vector<8x128xbf16>, vector<128x512xbf16>, vector<8x512xf32> -> vector<8x512xf32>
    %cst_3 = arith.constant dense<0.000000e+00> : vector<8x512xf32>
    %10 = tpu.matmul %5, %1, %cst_3 {dimension_numbers = #tpu.dot_dimension_numbers<[1], [0], [0], [1], [0, 0, 1, 1], [], []>} : vector<8x128xbf16>, vector<128x512xbf16>, vector<8x512xf32> -> vector<8x512xf32>
    %11 = arith.addf %9, %10 : vector<8x512xf32>
    %cst_4 = arith.constant dense<0.000000e+00> : vector<8x512xf32>
    %12 = tpu.matmul %8, %1, %cst_4 {dimension_numbers = #tpu.dot_dimension_numbers<[1], [0], [0], [1], [0, 0, 1, 1], [], []>} : vector<8x128xbf16>, vector<128x512xbf16>, vector<8x512xf32> -> vector<8x512xf32>
    %13 = arith.addf %11, %12 : vector<8x512xf32>
    %c0_5 = arith.constant 0 : index
    %c0_6 = arith.constant 0 : index
    %14 = vector.load %arg3[%c0_5, %c0_6] : memref<8x512xf32, #tpu.memory_space<vmem>>, vector<8x512xf32>
    tpu.vector_store %arg3[%c0_5, %c0_6], %13 {strides = array<i32>} : memref<8x512xf32, #tpu.memory_space<vmem>>, vector<8x512xf32>,
    return
  }
  func.func @transform_0(%arg0: i32) -> (i32, i32) {
    %c0_i32 = arith.constant 0 : i32
    %c0_i32_0 = arith.constant 0 : i32
    return %arg0, %c0_i32 : i32, i32
  }
  func.func @transform_1(%arg0: i32) -> (i32, i32) {
    %c0_i32 = arith.constant 0 : i32
    %c0_i32_0 = arith.constant 0 : i32
    %c0_i32_1 = arith.constant 0 : i32
    return %c0_i32, %c0_i32_0 : i32, i32
  }
  func.func @transform_2(%arg0: i32) -> (i32, i32) {
    %c0_i32 = arith.constant 0 : i32
    %c0_i32_0 = arith.constant 0 : i32
    return %arg0, %c0_i32 : i32, i32
  }
}

</mosaic_0001>

<llo_original>
// kernel: upsample_nearest_2x_nchw.1
$region0: #{upsample_nearest_2x_nchw.1}
  #allocation0 [shape = 'u32[]', space=smem, size = 0x4, offset = 0x4, fixed_abs, tag = 'smem constant byte address 0x4 - core index']
  #allocation1 [shape = 'u32[72,128]{1,0:T(1,128)}', space=vmem, size = 0x9000, scoped, tag = 'internal scratch']
  %s0 = inlined_call_operand.vmem [shape: f32[16,128], index: 0, kind: input, shape index: {}]
  %s1 = inlined_call_operand.hbm [shape: bf16[128,512], index: 1, kind: input, shape index: {}]
  %s2 = inlined_call_operand.vmem [shape: f32[16,512], index: 2, kind: output, shape index: {}]
  %s3 = sld [smem:[#allocation0]]
  $region45: #{upsample_nearest_2x_nchw.1} parent=0
    _
  %s5 = ssub.s32 1, %s3
  %s6 = scalar_select 0, %s5, %s3
  $region1: #{upsample_nearest_2x_nchw.1} parent=0
    #allocation2 [shape = 'u8[131072]{0}', space=vmem, size = 0x20000, scoped, tag = 'input window, operand 1, single buffered']
    #allocation3 [shape = 's32[2]{0}', space=sflag, size = 0x8, scoped, tag = 'scoped memory for upsample_nearest_2x_nchw.1']
    %7 = vsyncpa [#allocation3], 0
    loop: start=0, step=1, limit=4
    $region2: #{upsample_nearest_2x_nchw.1} parent=1 // loop_pre_header
      _
    $region3: #{upsample_nearest_2x_nchw.1} parent=1 // loop_header
      %s9 = sphi 0, %s13
      %p10 = scmp.ge.s32.totalorder %s9, 4
      %s19 = sphi 0, %s21
      %s22 = sphi 0, %s19
      %s23 = sphi 0, %s22
      %s39 = sphi 0, %s23
      %s43 = sphi 0, %s43
      %s45 = sphi 0, %s43
      %s46 = sphi 0, %s45
      %s60 = sphi 0, %s46
      %s66 = sphi 0, %s68
      %s69 = sphi 0, %s66
      %s70 = sphi 0, %s69
      %s86 = sphi 0, %s70
    $region4: #{upsample_nearest_2x_nchw.1} parent=1 // loop_header_branch
      %12 = sbr.rel (%p10) target = $region8
    $region5: #{upsample_nearest_2x_nchw.1} parent=1 // loop_body
      %s14 = ssub.s32 %s9, 1
      %s15 = ssub.s32 %s9, 2
      %s16 = sadd.s32 %s9, 1
      %s17 = ssub.s32 %s9, %s16
      %p18 = scmp.eq.s32.totalorder %s17, 0
      %s20 = sadd.s32 %s19, 1
      %s21 = scalar_select %p18, %s19, %s20
      %p24 = pneg %p18
      %p25 = scmp.eq.s32.totalorder %s9, 1
      %p26 = por %p24, %p25
      %p27 = scmp.ne.s32.totalorder %s19, %s22
      %p28 = scmp.eq.s32.totalorder %s9, 0
      %p29 = por %p27, %p28
      %p30 = scmp.ne.s32.totalorder %s19, %s22
      %p31 = scmp.eq.s32.totalorder %s14, 1
      %p32 = por %p30, %p31
      %p33 = scmp.ne.s32.totalorder %s22, %s23
      %p34 = scmp.eq.s32.totalorder %s14, 0
      %p35 = por %p33, %p34
      %p36 = scmp.ne.s32.totalorder %s22, %s23
      %p37 = scmp.eq.s32.totalorder %s15, 1
      %p38 = por %p36, %p37
      %p40 = scmp.ne.s32.totalorder %s23, %s39
      %p41 = scmp.eq.s32.totalorder %s15, 0
      %p42 = por %p40, %p41
      %s44 = sadd.s32 %s43, 1
      %p47 = scmp.eq.s32.totalorder %s9, 1
      %p48 = scmp.ne.s32.totalorder %s43, %s45
      %p49 = scmp.eq.s32.totalorder %s9, 0
      %p50 = por %p48, %p49
      %p51 = scmp.ne.s32.totalorder %s43, %s45
      %p52 = scmp.eq.s32.totalorder %s14, 1
      %p53 = por %p51, %p52
      %p54 = scmp.ne.s32.totalorder %s45, %s46
      %p55 = scmp.eq.s32.totalorder %s14, 0
      %p56 = por %p54, %p55
      %p57 = scmp.ne.s32.totalorder %s45, %s46
      %p58 = scmp.eq.s32.totalorder %s15, 1
      %p59 = por %p57, %p58
      %p61 = scmp.ne.s32.totalorder %s46, %s60
      %p62 = scmp.eq.s32.totalorder %s15, 0
      %p63 = por %p61, %p62
      %s64 = ssub.s32 %s9, %s16
      %p65 = scmp.eq.s32.totalorder %s64, 0
      %s67 = sadd.s32 %s66, 1
      %s68 = scalar_select %p65, %s66, %s67
      %p71 = pneg %p65
      %p72 = scmp.eq.s32.totalorder %s9, 1
      %p73 = por %p71, %p72
      %p74 = scmp.ne.s32.totalorder %s66, %s69
      %p75 = scmp.eq.s32.totalorder %s9, 0
      %p76 = por %p74, %p75
      %p77 = scmp.ne.s32.totalorder %s66, %s69
      %p78 = scmp.eq.s32.totalorder %s14, 1
      %p79 = por %p77, %p78
      %p80 = scmp.ne.s32.totalorder %s69, %s70
      %p81 = scmp.eq.s32.totalorder %s14, 0
      %p82 = por %p80, %p81
      %p83 = scmp.ne.s32.totalorder %s69, %s70
      %p84 = scmp.eq.s32.totalorder %s15, 1
      %p85 = por %p83, %p84
      %p87 = scmp.ne.s32.totalorder %s70, %s86
      %p88 = scmp.eq.s32.totalorder %s15, 0
      %p89 = por %p87, %p88
      %p90 = scmp.le.s32.totalorder 1, %s9
      %p91 = scmp.lt.s32.totalorder %s9, 3
      %p92 = pnand %p90, %p91
      %p93 = pneg %p92
      // Predicated region
      $region9: #{upsample_nearest_2x_nchw.1} parent=5 // pred_check
        _
      $region10: #{upsample_nearest_2x_nchw.1} parent=5 // pred_check_branch
        %95 = sbr.rel (%p92) target = $region12
      $region11: #{upsample_nearest_2x_nchw.1} parent=5 // pred_region
        %s96 = ssub.s32 %s9, 1
        // Predicated region
        $region13: #{upsample_nearest_2x_nchw.1} parent=11 // pred_check
          %p97 = pneg %p56
        $region14: #{upsample_nearest_2x_nchw.1} parent=11 // pred_check_branch
          %99 = sbr.rel (%p97) target = $region16
        $region15: #{upsample_nearest_2x_nchw.1} parent=11 // pred_region
          %101 = vsyncadd [#allocation3], 0
          %s102 = sshll.u32 %s1, 4
          %s103 = int_to_ptr.hbm [resolvable:$true] %s102
          %s104 = sshll.u32 [#allocation2], 4
          %s105 = int_to_ptr.vmem [resolvable:$true] %s104
          %110 = dma.hbm_to_vmem [thread:$0]  %s103, 4096, %s105, [#allocation3], 256, 256, 16
        $region16: #{upsample_nearest_2x_nchw.1} parent=11 // pred_fallthru
          _
      $region12: #{upsample_nearest_2x_nchw.1} parent=5 // pred_fallthru
        _
      %p111 = scmp.lt.s32.totalorder %s9, 2
      // Predicated region
      $region17: #{upsample_nearest_2x_nchw.1} parent=5 // pred_check
        %p112 = pneg %p111
      $region18: #{upsample_nearest_2x_nchw.1} parent=5 // pred_check_branch
        %114 = sbr.rel (%p112) target = $region20
      $region19: #{upsample_nearest_2x_nchw.1} parent=5 // pred_region
        // Predicated region
        $region21: #{upsample_nearest_2x_nchw.1} parent=19 // pred_check
          %p115 = pneg %p29
        $region22: #{upsample_nearest_2x_nchw.1} parent=19 // pred_check_branch
          %117 = sbr.rel (%p115) target = $region24
        $region23: #{upsample_nearest_2x_nchw.1} parent=19 // pred_region
          %p118 = scmp.lt.s32.totalorder %s9, 1
          %s119 = scalar_select %p118, %s9, 1
          %s120 = smul.addr %s119, 8
          %s121 = scalar_lea.vmem %s0, %s120
        $region24: #{upsample_nearest_2x_nchw.1} parent=19 // pred_fallthru
          _
      $region20: #{upsample_nearest_2x_nchw.1} parent=5 // pred_fallthru
        _
      %p122 = scmp.le.s32.totalorder 1, %s9
      %p123 = scmp.lt.s32.totalorder %s9, 3
      %p124 = pnand %p122, %p123
      %p125 = pneg %p124
      // Predicated region
      $region25: #{upsample_nearest_2x_nchw.1} parent=5 // pred_check
        _
      $region26: #{upsample_nearest_2x_nchw.1} parent=5 // pred_check_branch
        %127 = sbr.rel (%p124) target = $region28
      $region27: #{upsample_nearest_2x_nchw.1} parent=5 // pred_region
        %s128 = ssub.s32 %s9, 1
        // Predicated region
        $region29: #{upsample_nearest_2x_nchw.1} parent=27 // pred_check
          %p129 = pneg %p56
        $region30: #{upsample_nearest_2x_nchw.1} parent=27 // pred_check_branch
          %131 = sbr.rel (%p129) target = $region32
        $region31: #{upsample_nearest_2x_nchw.1} parent=27 // pred_region
          %133 = dma.done [#allocation3], 4096
        $region32: #{upsample_nearest_2x_nchw.1} parent=27 // pred_fallthru
          _
        %p134 = scmp.lt.s32.totalorder %s14, 1
        %s135 = scalar_select %p134, %s14, 1
        %s136 = smul.addr %s135, 8
        %s137 = scalar_lea.vmem %s0, %s136
        %p138 = pneg %p35
        %p139 = pneg %p32
        %p140 = pneg %p56
        %p141 = pneg %p53
        %p142 = pneg %p82
        %p143 = pneg %p79
        %p144 = scmp.lt.s32.totalorder %s14, 1
        %s145 = scalar_select %p144, %s14, 1
        %s146 = smul.addr %s145, 4
        %s147 = smul.addr %s146, 8
        %s148 = scalar_lea.vmem %s2, %s147
        %p149 = scmp.lt.s32.totalorder %s14, 1
        %s150 = scalar_select %p149, %s14, 1
        %s151 = smul.addr %s150, 8
        %s152 = scalar_lea.vmem %s0, %s151
        %p153 = scmp.lt.s32.totalorder %s14, 1
        %s154 = scalar_select %p153, %s14, 1
        %s155 = smul.addr %s154, 4
        %s156 = smul.addr %s155, 8
        %s157 = scalar_lea.vmem %s2, %s156
        %v158 = vld [vmem:[%s152] sm:$0xff]
        %v159 = vld [vmem:[#allocation2] sm:$0xff]
        %v160 = vld [vmem:[#allocation2 + $0x8] sm:$0xff]
        %v161 = vld [vmem:[#allocation2 + $0x10] sm:$0xff]
        %v162 = vld [vmem:[#allocation2 + $0x18] sm:$0xff]
        %v163 = vld [vmem:[#allocation2 + $0x20] sm:$0xff]
        %v164 = vld [vmem:[#allocation2 + $0x28] sm:$0xff]
        %v165 = vld [vmem:[#allocation2 + $0x30] sm:$0xff]
        %v166 = vld [vmem:[#allocation2 + $0x38] sm:$0xff]
        %v167 = vld [vmem:[#allocation2 + $0x40] sm:$0xff]
        %v168 = vld [vmem:[#allocation2 + $0x48] sm:$0xff]
        %v169 = vld [vmem:[#allocation2 + $0x50] sm:$0xff]
        %v170 = vld [vmem:[#allocation2 + $0x58] sm:$0xff]
        %v171 = vld [vmem:[#allocation2 + $0x60] sm:$0xff]
        %v172 = vld [vmem:[#allocation2 + $0x68] sm:$0xff]
        %v173 = vld [vmem:[#allocation2 + $0x70] sm:$0xff]
        %v174 = vld [vmem:[#allocation2 + $0x78] sm:$0xff]
        %v175 = vld [vmem:[#allocation2 + $0x80] sm:$0xff]
        %v176 = vld [vmem:[#allocation2 + $0x88] sm:$0xff]
        %v177 = vld [vmem:[#allocation2 + $0x90] sm:$0xff]
        %v178 = vld [vmem:[#allocation2 + $0x98] sm:$0xff]
        %v179 = vld [vmem:[#allocation2 + $0xa0] sm:$0xff]
        %v180 = vld [vmem:[#allocation2 + $0xa8] sm:$0xff]
        %v181 = vld [vmem:[#allocation2 + $0xb0] sm:$0xff]
        %v182 = vld [vmem:[#allocation2 + $0xb8] sm:$0xff]
        %v183 = vld [vmem:[#allocation2 + $0xc0] sm:$0xff]
        %v184 = vld [vmem:[#allocation2 + $0xc8] sm:$0xff]
        %v185 = vld [vmem:[#allocation2 + $0xd0] sm:$0xff]
        %v186 = vld [vmem:[#allocation2 + $0xd8] sm:$0xff]
        %v187 = vld [vmem:[#allocation2 + $0xe0] sm:$0xff]
        %v188 = vld [vmem:[#allocation2 + $0xe8] sm:$0xff]
        %v189 = vld [vmem:[#allocation2 + $0xf0] sm:$0xff]
        %v190 = vld [vmem:[#allocation2 + $0xf8] sm:$0xff]
        %v191 = vpack.c.bf16 %v158, %v158
        %v192 = vunpack.c.l.bf16 %v191
        %v193 = vsub.f32 %v158, %v192
        %v194 = vpack.c.bf16 %v193, %v193
        %v195 = vunpack.c.l.bf16 %v194
        %v196 = vsub.f32 %v193, %v195
        %v197 = vpack.c.bf16 %v196, %v196
        %v230 = vunpack.c.l.b16 %v159
        %v231 = vunpack.c.h.b16 %v159
        %v232 = vunpack.c.l.b16 %v160
        %v233 = vunpack.c.h.b16 %v160
        %v234 = vunpack.c.l.b16 %v161
        %v235 = vunpack.c.h.b16 %v161
        %v236 = vunpack.c.l.b16 %v162
        %v237 = vunpack.c.h.b16 %v162
        %v238 = vunpack.c.l.b16 %v163
        %v239 = vunpack.c.h.b16 %v163
        %v240 = vunpack.c.l.b16 %v164
        %v241 = vunpack.c.h.b16 %v164
        %v242 = vunpack.c.l.b16 %v165
        %v243 = vunpack.c.h.b16 %v165
        %v244 = vunpack.c.l.b16 %v166
        %v245 = vunpack.c.h.b16 %v166
        %v246 = vunpack.c.l.b16 %v167
        %v247 = vunpack.c.h.b16 %v167
        %v248 = vunpack.c.l.b16 %v168
        %v249 = vunpack.c.h.b16 %v168
        %v250 = vunpack.c.l.b16 %v169
        %v251 = vunpack.c.h.b16 %v169
        %v252 = vunpack.c.l.b16 %v170
        %v253 = vunpack.c.h.b16 %v170
        %v254 = vunpack.c.l.b16 %v171
        %v255 = vunpack.c.h.b16 %v171
        %v256 = vunpack.c.l.b16 %v172
        %v257 = vunpack.c.h.b16 %v172
        %v258 = vunpack.c.l.b16 %v173
        %v259 = vunpack.c.h.b16 %v173
        %v260 = vunpack.c.l.b16 %v174
        %v261 = vunpack.c.h.b16 %v174
        %v262 = vunpack.c.l.b16 %v175
        %v263 = vunpack.c.h.b16 %v175
        %v264 = vunpack.c.l.b16 %v176
        %v265 = vunpack.c.h.b16 %v176
        %v266 = vunpack.c.l.b16 %v177
        %v267 = vunpack.c.h.b16 %v177
        %v268 = vunpack.c.l.b16 %v178
        %v269 = vunpack.c.h.b16 %v178
        %v270 = vunpack.c.l.b16 %v179
        %v271 = vunpack.c.h.b16 %v179
        %v272 = vunpack.c.l.b16 %v180
        %v273 = vunpack.c.h.b16 %v180
        %v274 = vunpack.c.l.b16 %v181
        %v275 = vunpack.c.h.b16 %v181
        %v276 = vunpack.c.l.b16 %v182
        %v277 = vunpack.c.h.b16 %v182
        %v278 = vunpack.c.l.b16 %v183
        %v279 = vunpack.c.h.b16 %v183
        %v280 = vunpack.c.l.b16 %v184
        %v281 = vunpack.c.h.b16 %v184
        %v282 = vunpack.c.l.b16 %v185
        %v283 = vunpack.c.h.b16 %v185
        %v284 = vunpack.c.l.b16 %v186
        %v285 = vunpack.c.h.b16 %v186
        %v286 = vunpack.c.l.b16 %v187
        %v287 = vunpack.c.h.b16 %v187
        %v288 = vunpack.c.l.b16 %v188
        %v289 = vunpack.c.h.b16 %v188
        %v290 = vunpack.c.l.b16 %v189
        %v291 = vunpack.c.h.b16 %v189
        %v292 = vunpack.c.l.b16 %v190
        %v293 = vunpack.c.h.b16 %v190
        %v294 = vpack.c.b16 %v234, %v230
        %v295 = vpack.c.b16 %v235, %v231
        %v296 = vpack.c.b16 %v236, %v232
        %v297 = vpack.c.b16 %v237, %v233
        %v298 = vpack.c.b16 %v242, %v238
        %v299 = vpack.c.b16 %v243, %v239
        %v300 = vpack.c.b16 %v244, %v240
        %v301 = vpack.c.b16 %v245, %v241
        %v302 = vpack.c.b16 %v250, %v246
        %v303 = vpack.c.b16 %v251, %v247
        %v304 = vpack.c.b16 %v252, %v248
        %v305 = vpack.c.b16 %v253, %v249
        %v306 = vpack.c.b16 %v258, %v254
        %v307 = vpack.c.b16 %v259, %v255
        %v308 = vpack.c.b16 %v260, %v256
        %v309 = vpack.c.b16 %v261, %v257
        %v310 = vpack.c.b16 %v266, %v262
        %v311 = vpack.c.b16 %v267, %v263
        %v312 = vpack.c.b16 %v268, %v264
        %v313 = vpack.c.b16 %v269, %v265
        %v314 = vpack.c.b16 %v274, %v270
        %v315 = vpack.c.b16 %v275, %v271
        %v316 = vpack.c.b16 %v276, %v272
        %v317 = vpack.c.b16 %v277, %v273
        %v318 = vpack.c.b16 %v282, %v278
        %v319 = vpack.c.b16 %v283, %v279
        %v320 = vpack.c.b16 %v284, %v280
        %v321 = vpack.c.b16 %v285, %v281
        %v322 = vpack.c.b16 %v290, %v286
        %v323 = vpack.c.b16 %v291, %v287
        %v324 = vpack.c.b16 %v292, %v288
        %v325 = vpack.c.b16 %v293, %v289
        %358 = vmatpush.bf16.msra.mxu0 %v322
        %359 = vmatpush.bf16.msra.mxu0 %v318
        %360 = vmatpush.bf16.msra.mxu0 %v314
        %361 = vmatpush.bf16.msra.mxu0 %v310
        %362 = vmatpush.bf16.msra.mxu0 %v306
        %363 = vmatpush.bf16.msra.mxu0 %v302
        %364 = vmatpush.bf16.msra.mxu0 %v298
        %365 = vmatpush.bf16.msra.mxu0 %v294
        %366 = vmatmul.bf16.gmra.mxu0 %v194
        %v367 = vpop.f32.mrf.mxu0
        %v368 = vadd.f32 0.0, %v367
        %v369 = vpop.f32.mrf.mxu0
        %370 = vdwg.mxu0
        %371 = vmatpush.bf16.msra.mxu0 %v323
        %372 = vmatpush.bf16.msra.mxu0 %v319
        %373 = vmatpush.bf16.msra.mxu0 %v315
        %374 = vmatpush.bf16.msra.mxu0 %v311
        %375 = vmatpush.bf16.msra.mxu0 %v307
        %376 = vmatpush.bf16.msra.mxu0 %v303
        %377 = vmatpush.bf16.msra.mxu0 %v299
        %378 = vmatpush.bf16.msra.mxu0 %v295
        %379 = vmatmul.bf16.gmra.mxu0 %v194
        %v380 = vpop.f32.mrf.mxu0
        %v381 = vadd.f32 0.0, %v380
        %v382 = vpop.f32.mrf.mxu0
        %383 = vdwg.mxu0
        %384 = vmatpush.bf16.msra.mxu0 %v324
        %385 = vmatpush.bf16.msra.mxu0 %v320
        %386 = vmatpush.bf16.msra.mxu0 %v316
        %387 = vmatpush.bf16.msra.mxu0 %v312
        %388 = vmatpush.bf16.msra.mxu0 %v308
        %389 = vmatpush.bf16.msra.mxu0 %v304
        %390 = vmatpush.bf16.msra.mxu0 %v300
        %391 = vmatpush.bf16.msra.mxu0 %v296
        %392 = vmatmul.bf16.gmra.mxu0 %v194
        %v393 = vpop.f32.mrf.mxu0
        %v394 = vadd.f32 0.0, %v393
        %v395 = vpop.f32.mrf.mxu0
        %396 = vdwg.mxu0
        %397 = vmatpush.bf16.msra.mxu0 %v325
        %398 = vmatpush.bf16.msra.mxu0 %v321
        %399 = vmatpush.bf16.msra.mxu0 %v317
        %400 = vmatpush.bf16.msra.mxu0 %v313
        %401 = vmatpush.bf16.msra.mxu0 %v309
        %402 = vmatpush.bf16.msra.mxu0 %v305
        %403 = vmatpush.bf16.msra.mxu0 %v301
        %404 = vmatpush.bf16.msra.mxu0 %v297
        %405 = vmatmul.bf16.gmra.mxu0 %v194
        %v406 = vpop.f32.mrf.mxu0
        %v407 = vadd.f32 0.0, %v406
        %v408 = vpop.f32.mrf.mxu0
        %409 = vdwg.mxu0
        %410 = vmatpush.bf16.msra.mxu0 %v322
        %411 = vmatpush.bf16.msra.mxu0 %v318
        %412 = vmatpush.bf16.msra.mxu0 %v314
        %413 = vmatpush.bf16.msra.mxu0 %v310
        %414 = vmatpush.bf16.msra.mxu0 %v306
        %415 = vmatpush.bf16.msra.mxu0 %v302
        %416 = vmatpush.bf16.msra.mxu0 %v298
        %417 = vmatpush.bf16.msra.mxu0 %v294
        %418 = vmatmul.bf16.gmra.mxu0 %v191
        %v419 = vpop.f32.mrf.mxu0
        %v420 = vadd.f32 %v368, %v419
        %v421 = vpop.f32.mrf.mxu0
        %422 = vdwg.mxu0
        %423 = vmatpush.bf16.msra.mxu0 %v323
        %424 = vmatpush.bf16.msra.mxu0 %v319
        %425 = vmatpush.bf16.msra.mxu0 %v315
        %426 = vmatpush.bf16.msra.mxu0 %v311
        %427 = vmatpush.bf16.msra.mxu0 %v307
        %428 = vmatpush.bf16.msra.mxu0 %v303
        %429 = vmatpush.bf16.msra.mxu0 %v299
        %430 = vmatpush.bf16.msra.mxu0 %v295
        %431 = vmatmul.bf16.gmra.mxu0 %v191
        %v432 = vpop.f32.mrf.mxu0
        %v433 = vadd.f32 %v381, %v432
        %v434 = vpop.f32.mrf.mxu0
        %435 = vdwg.mxu0
        %436 = vmatpush.bf16.msra.mxu0 %v324
        %437 = vmatpush.bf16.msra.mxu0 %v320
        %438 = vmatpush.bf16.msra.mxu0 %v316
        %439 = vmatpush.bf16.msra.mxu0 %v312
        %440 = vmatpush.bf16.msra.mxu0 %v308
        %441 = vmatpush.bf16.msra.mxu0 %v304
        %442 = vmatpush.bf16.msra.mxu0 %v300
        %443 = vmatpush.bf16.msra.mxu0 %v296
        %444 = vmatmul.bf16.gmra.mxu0 %v191
        %v445 = vpop.f32.mrf.mxu0
        %v446 = vadd.f32 %v394, %v445
        %v447 = vpop.f32.mrf.mxu0
        %448 = vdwg.mxu0
        %449 = vmatpush.bf16.msra.mxu0 %v325
        %450 = vmatpush.bf16.msra.mxu0 %v321
        %451 = vmatpush.bf16.msra.mxu0 %v317
        %452 = vmatpush.bf16.msra.mxu0 %v313
        %453 = vmatpush.bf16.msra.mxu0 %v309
        %454 = vmatpush.bf16.msra.mxu0 %v305
        %455 = vmatpush.bf16.msra.mxu0 %v301
        %456 = vmatpush.bf16.msra.mxu0 %v297
        %457 = vmatmul.bf16.gmra.mxu0 %v191
        %v458 = vpop.f32.mrf.mxu0
        %v459 = vadd.f32 %v407, %v458
        %v460 = vpop.f32.mrf.mxu0
        %461 = vdwg.mxu0
        %462 = vmatpush.bf16.msra.mxu0 %v322
        %463 = vmatpush.bf16.msra.mxu0 %v318
        %464 = vmatpush.bf16.msra.mxu0 %v314
        %465 = vmatpush.bf16.msra.mxu0 %v310
        %466 = vmatpush.bf16.msra.mxu0 %v306
        %467 = vmatpush.bf16.msra.mxu0 %v302
        %468 = vmatpush.bf16.msra.mxu0 %v298
        %469 = vmatpush.bf16.msra.mxu0 %v294
        %470 = vmatmul.bf16.gmra.mxu0 %v197
        %v471 = vpop.f32.mrf.mxu0
        %v472 = vadd.f32 0.0, %v471
        %v473 = vpop.f32.mrf.mxu0
        %474 = vdwg.mxu0
        %475 = vmatpush.bf16.msra.mxu0 %v323
        %476 = vmatpush.bf16.msra.mxu0 %v319
        %477 = vmatpush.bf16.msra.mxu0 %v315
        %478 = vmatpush.bf16.msra.mxu0 %v311
        %479 = vmatpush.bf16.msra.mxu0 %v307
        %480 = vmatpush.bf16.msra.mxu0 %v303
        %481 = vmatpush.bf16.msra.mxu0 %v299
        %482 = vmatpush.bf16.msra.mxu0 %v295
        %483 = vmatmul.bf16.gmra.mxu0 %v197
        %v484 = vpop.f32.mrf.mxu0
        %v485 = vadd.f32 0.0, %v484
        %v486 = vpop.f32.mrf.mxu0
        %487 = vdwg.mxu0
        %488 = vmatpush.bf16.msra.mxu0 %v324
        %489 = vmatpush.bf16.msra.mxu0 %v320
        %490 = vmatpush.bf16.msra.mxu0 %v316
        %491 = vmatpush.bf16.msra.mxu0 %v312
        %492 = vmatpush.bf16.msra.mxu0 %v308
        %493 = vmatpush.bf16.msra.mxu0 %v304
        %494 = vmatpush.bf16.msra.mxu0 %v300
        %495 = vmatpush.bf16.msra.mxu0 %v296
        %496 = vmatmul.bf16.gmra.mxu0 %v197
        %v497 = vpop.f32.mrf.mxu0
        %v498 = vadd.f32 0.0, %v497
        %v499 = vpop.f32.mrf.mxu0
        %500 = vdwg.mxu0
        %501 = vmatpush.bf16.msra.mxu0 %v325
        %502 = vmatpush.bf16.msra.mxu0 %v321
        %503 = vmatpush.bf16.msra.mxu0 %v317
        %504 = vmatpush.bf16.msra.mxu0 %v313
        %505 = vmatpush.bf16.msra.mxu0 %v309
        %506 = vmatpush.bf16.msra.mxu0 %v305
        %507 = vmatpush.bf16.msra.mxu0 %v301
        %508 = vmatpush.bf16.msra.mxu0 %v297
        %509 = vmatmul.bf16.gmra.mxu0 %v197
        %v510 = vpop.f32.mrf.mxu0
        %v511 = vadd.f32 0.0, %v510
        %v512 = vpop.f32.mrf.mxu0
        %513 = vdwg.mxu0
        %v514 = vadd.f32 %v420, %v472
        %v515 = vadd.f32 %v433, %v485
        %v516 = vadd.f32 %v446, %v498
        %v517 = vadd.f32 %v459, %v511
        %518 = vst [vmem:[%s157] sm:$0xff] %v514
        %519 = vst [vmem:[%s157 + $0x8] sm:$0xff] %v515
        %520 = vst [vmem:[%s157 + $0x10] sm:$0xff] %v516
        %521 = vst [vmem:[%s157 + $0x18] sm:$0xff] %v517
        %p522 = scmp.lt.s32.totalorder %s14, 1
        %s523 = scalar_select %p522, %s14, 1
        %s524 = smul.addr %s523, 4
        %s525 = smul.addr %s524, 8
        %s526 = scalar_lea.vmem %s2, %s525
        // Predicated region
        $region33: #{upsample_nearest_2x_nchw.1} parent=27 // pred_check
          %p527 = pneg %p79
        $region34: #{upsample_nearest_2x_nchw.1} parent=27 // pred_check_branch
          %529 = sbr.rel (%p527) target = $region36
        $region35: #{upsample_nearest_2x_nchw.1} parent=27 // pred_region
          _
        $region36: #{upsample_nearest_2x_nchw.1} parent=27 // pred_fallthru
          _
      $region28: #{upsample_nearest_2x_nchw.1} parent=5 // pred_fallthru
        _
      %p530 = scmp.le.s32.totalorder 2, %s9
      // Predicated region
      $region37: #{upsample_nearest_2x_nchw.1} parent=5 // pred_check
        %p531 = pneg %p530
      $region38: #{upsample_nearest_2x_nchw.1} parent=5 // pred_check_branch
        %533 = sbr.rel (%p531) target = $region40
      $region39: #{upsample_nearest_2x_nchw.1} parent=5 // pred_region
        %s534 = ssub.s32 %s9, 2
        // Predicated region
        $region41: #{upsample_nearest_2x_nchw.1} parent=39 // pred_check
          %p535 = pneg %p85
        $region42: #{upsample_nearest_2x_nchw.1} parent=39 // pred_check_branch
          %537 = sbr.rel (%p535) target = $region44
        $region43: #{upsample_nearest_2x_nchw.1} parent=39 // pred_region
          %p538 = scmp.lt.s32.totalorder %s15, 1
          %s539 = scalar_select %p538, %s15, 1
          %s540 = smul.addr %s539, 4
          %s541 = smul.addr %s540, 8
          %s542 = scalar_lea.vmem %s2, %s541
        $region44: #{upsample_nearest_2x_nchw.1} parent=39 // pred_fallthru
          _
      $region40: #{upsample_nearest_2x_nchw.1} parent=5 // pred_fallthru
        _
    $region6: #{upsample_nearest_2x_nchw.1} parent=1 // loop_footer
      %s13 = sadd.s32 1, %s9
    $region7: #{upsample_nearest_2x_nchw.1} parent=1 // loop_footer_branch
      %8 = sbr.rel target = $region3
    $region8: #{upsample_nearest_2x_nchw.1} parent=1 // loop_exit
      _
    %543 = vsyncpa [#allocation3], 1
    %s544 = scalar_lea.sflag [#allocation3], 1
    %545 = vsyncpa %s544, 1

</llo_original>
